<compile_context>
chip_gen: v7x
topology: tpu7x:2x2x1
jax: 0.10.0
libtpu: 0.0.40
codegen_flags: <defaults>
</compile_context>

<pallas_src>
import functools

import jax
import jax.numpy as jnp
from jax.experimental import pallas as pl
from jax.experimental.pallas import tpu as pltpu


def _interval_loss_kernel(valid_last_rows, out_rows, y_ref, a_ref, b_ref, out_ref):
    """One grid step: reduce a (tile_rows, 128) block to a (out_rows, 128) partial sum."""
    tile_rows, lanes = y_ref.shape
    n_slabs = tile_rows // out_rows

    def slab(s, valid_rows):
        r0 = s * out_rows
        if not isinstance(r0, int):
            r0 = pl.multiple_of(r0, out_rows)
        # DMA happened in native dtype; do the arithmetic in f32 on the VPU.
        y = y_ref[pl.ds(r0, out_rows), :].astype(jnp.float32)
        a = a_ref[pl.ds(r0, out_rows), :].astype(jnp.float32)
        b = b_ref[pl.ds(r0, out_rows), :].astype(jnp.float32)
        lo = jnp.maximum(a - y, 0.0)   # relu(a - Y_pred)
        hi = jnp.maximum(y - b, 0.0)   # relu(Y_pred - b)
        c = lo * lo + hi * hi
        if valid_rows is not None:
            # Only the (runtime-gated) last block pays for this: zero rows
            # beyond the true end of the array.  Static threshold, int32 is
            # only ever compared against a within-block row index.
            rid = jax.lax.broadcasted_iota(jnp.int32, (out_rows, lanes), 0) + s * out_rows
            c = jnp.where(rid < valid_rows, c, 0.0)
        return c

    def accumulate(num_slabs, valid_rows=None):
        acc = slab(0, valid_rows)
        if num_slabs == 1:
            return acc
        if num_slabs <= 8:
            for s in range(1, num_slabs):
                acc = acc + slab(s, valid_rows)
            return acc

        def body(s, a_):
            return a_ + slab(s, valid_rows)

        return jax.lax.fori_loop(1, num_slabs, body, acc, unroll=4)

    if valid_last_rows is None:
        # Fully aligned: identical work on every step, no masking anywhere.
        out_ref[...] = accumulate(n_slabs)
    else:
        i = pl.program_id(0)
        last = pl.num_programs(0) - 1

        @pl.when(i != last)
        def _():
            out_ref[...] = accumulate(n_slabs)

        @pl.when(i == last)
        def _():
            num = -(-valid_last_rows // out_rows)      # static ceil-div
            out_ref[...] = accumulate(num, valid_last_rows)


def interval_loss(y_pred, a, b, *, lanes=128, out_rows=64,
                  target_block_bytes=4 * 1024 * 1024):
    """mean(relu(a - y)^2 + relu(y - b)^2) via a Pallas TPU streaming kernel."""
    assert y_pred.shape == a.shape == b.shape
    total_n = y_pred.size
    assert total_n > 0

    y_flat = y_pred.reshape(-1)
    a_flat = a.reshape(-1)
    b_flat = b.reshape(-1)

    # Split off a (<128-element) ragged tail, handled in plain JAX, so the body
    # reshapes to a lane-dense (rows, 128) slab with no padding copy.
    body_n = (total_n // lanes) * lanes
    tail_n = total_n - body_n

    tail_sum = jnp.float32(0.0)
    if tail_n:
        yt = y_flat[body_n:].astype(jnp.float32)
        at = a_flat[body_n:].astype(jnp.float32)
        bt = b_flat[body_n:].astype(jnp.float32)
        lo = jnp.maximum(at - yt, 0.0)
        hi = jnp.maximum(yt - bt, 0.0)
        tail_sum = jnp.sum(lo * lo + hi * hi)

    if body_n == 0:
        return tail_sum / jnp.float32(total_n)

    rows = body_n // lanes
    itemsize = jnp.dtype(y_pred.dtype).itemsize
    # Dtype-aware sublane granule (8 for 32-bit, 16 for bf16, 32 for int8/fp8)
    # so block boundaries stay aligned to the packed layout.
    granule = max(8, 32 // itemsize)

    if rows >= granule:
        out_rows = min(out_rows, (rows // granule) * granule)
        default_tile = max(out_rows,
                           (target_block_bytes // (lanes * itemsize)) // out_rows * out_rows)
        tile_rows = min(default_tile, (rows // out_rows) * out_rows)
    else:
        out_rows = rows
        tile_rows = rows

    grid = (pl.cdiv(rows, tile_rows),)
    valid_last_rows = None
    if rows % tile_rows != 0:
        valid_last_rows = rows - (grid[0] - 1) * tile_rows   # static

    def _slab2d(x):
        body = x if tail_n == 0 else x[:body_n]
        return body.reshape(rows, lanes)     # free reshape in the aligned case

    y2, a2, b2 = _slab2d(y_flat), _slab2d(a_flat), _slab2d(b_flat)

    tile_bytes = tile_rows * lanes * itemsize
    # 3 inputs x 2 pipeline buffers + double-buffered tiny output + headroom.
    vmem_need = 6 * tile_bytes + 4 * out_rows * lanes * 4 + (2 << 20)
    vmem_limit = int(max(vmem_need, 32 * 1024 * 1024))   # <= v7x 64 MiB/TC physical

    cost = pl.CostEstimate(
        flops=8 * body_n,
        transcendentals=0,
        bytes_accessed=3 * itemsize * body_n + 4 * out_rows * lanes * grid[0],
    )

    kernel = functools.partial(_interval_loss_kernel, valid_last_rows, out_rows)

    partials = pl.pallas_call(
        kernel,
        out_shape=jax.ShapeDtypeStruct((grid[0], out_rows, lanes), jnp.float32),
        grid=grid,
        in_specs=[
            pl.BlockSpec((tile_rows, lanes), lambda i: (i, 0)),
            pl.BlockSpec((tile_rows, lanes), lambda i: (i, 0)),
            pl.BlockSpec((tile_rows, lanes), lambda i: (i, 0)),
        ],
        out_specs=pl.BlockSpec((None, out_rows, lanes), lambda i: (i, 0, 0)),
        compiler_params=pltpu.CompilerParams(
            dimension_semantics=("parallel",),
            vmem_limit_bytes=vmem_limit,
        ),
        cost_estimate=cost,
    )(y2, a2, b2)

    # Tiny (grid, out_rows, 128) partial-sum array -> final mean in plain JAX.
    return (jnp.sum(partials) + tail_sum) / jnp.float32(total_n)


def _reference(y_pred, a, b):
    lo = jnp.maximum(a - y_pred, 0.0)
    hi = jnp.maximum(y_pred - b, 0.0)
    return jnp.mean(lo * lo + hi * hi)


if __name__ == "__main__":
    key = jax.random.PRNGKey(0)

    # Case 1: small NCHW-shaped tensors, consistent with a conv-model prediction.
    k1, k2, k3, k4, k5, k6 = jax.random.split(key, 6)
    shape = (2, 4, 16, 16)
    y_pred = jax.random.normal(k1, shape, dtype=jnp.float32)
    center = jax.random.normal(k2, shape, dtype=jnp.float32)
    half_w = jax.random.uniform(k3, shape, dtype=jnp.float32)  # >= 0
    a = center - half_w   # lower bound
    b = center + half_w   # upper bound

    loss = jax.block_until_ready(interval_loss(y_pred, a, b))
    ref = _reference(y_pred, a, b)
    assert jnp.allclose(loss, ref, rtol=1e-5, atol=1e-6), (loss, ref)

    # Case 2: ragged size (exercises the masked last block + plain-JAX tail).
    shape2 = (3, 5, 7, 11)   # 1155 elements: 9 full lanes-rows + 3-element tail
    y2 = jax.random.normal(k4, shape2, dtype=jnp.float32)
    c2 = jax.random.normal(k5, shape2, dtype=jnp.float32)
    w2 = jax.random.uniform(k6, shape2, dtype=jnp.float32)
    a2, b2 = c2 - w2, c2 + w2

    loss2 = jax.block_until_ready(interval_loss(y2, a2, b2))
    ref2 = _reference(y2, a2, b2)
    assert jnp.allclose(loss2, ref2, rtol=1e-5, atol=1e-6), (loss2, ref2)

    print("KERNEL_OK")
</pallas_src>

<mosaic_0001>
module attributes {stable_mosaic.version = 11 : i64} {
  func.func @_interval_loss_kernel(%arg0: i32, %arg1: memref<16x128xf32, #tpu.memory_space<vmem>>, %arg2: memref<16x128xf32, #tpu.memory_space<vmem>>, %arg3: memref<16x128xf32, #tpu.memory_space<vmem>>, %arg4: memref<1x16x128xf32, #tpu.memory_space<vmem>>) attributes {dimension_semantics = [#tpu.dimension_semantics<parallel>], iteration_bounds = array<i64: 1>, scalar_prefetch = 0 : i64, scratch_operands = 0 : i64, tpu.core_type = #tpu.core_type<tc>, window_params = [{transform_indices = @transform_0, window_bounds = array<i64: 16, 128>}, {transform_indices = @transform_1, window_bounds = array<i64: 16, 128>}, {transform_indices = @transform_2, window_bounds = array<i64: 16, 128>}, {transform_indices = @transform_3, window_bounds = array<i64: 1, 16, 128>}]} {
    %c0 = arith.constant 0 : index
    %c0_0 = arith.constant 0 : index
    %0 = vector.load %arg1[%c0, %c0_0] : memref<16x128xf32, #tpu.memory_space<vmem>>, vector<16x128xf32>
    %c0_1 = arith.constant 0 : index
    %c0_2 = arith.constant 0 : index
    %1 = vector.load %arg2[%c0_1, %c0_2] : memref<16x128xf32, #tpu.memory_space<vmem>>, vector<16x128xf32>
    %c0_3 = arith.constant 0 : index
    %c0_4 = arith.constant 0 : index
    %2 = vector.load %arg3[%c0_3, %c0_4] : memref<16x128xf32, #tpu.memory_space<vmem>>, vector<16x128xf32>
    %3 = arith.subf %1, %0 : vector<16x128xf32>
    %cst = arith.constant 0.000000e+00 : f32
    %4 = vector.broadcast %cst : f32 to vector<16x128xf32>
    %5 = arith.maximumf %3, %4 : vector<16x128xf32>
    %6 = arith.subf %0, %2 : vector<16x128xf32>
    %cst_5 = arith.constant 0.000000e+00 : f32
    %7 = vector.broadcast %cst_5 : f32 to vector<16x128xf32>
    %8 = arith.maximumf %6, %7 : vector<16x128xf32>
    %9 = arith.mulf %5, %5 : vector<16x128xf32>
    %10 = arith.mulf %8, %8 : vector<16x128xf32>
    %11 = arith.addf %9, %10 : vector<16x128xf32>
    %c0_6 = arith.constant 0 : index
    %c0_7 = arith.constant 0 : index
    %c0_8 = arith.constant 0 : index
    %12 = vector.load %arg4[%c0_6, %c0_7, %c0_8] : memref<1x16x128xf32, #tpu.memory_space<vmem>>, vector<1x16x128xf32>
    %13 = vector.shape_cast %12 : vector<1x16x128xf32> to vector<16x128xf32>
    %14 = vector.shape_cast %11 : vector<16x128xf32> to vector<1x16x128xf32>
    tpu.vector_store %arg4[%c0_6, %c0_7, %c0_8], %14 {strides = array<i32>} : memref<1x16x128xf32, #tpu.memory_space<vmem>>, vector<1x16x128xf32>,
    return
  }
  func.func @transform_0(%arg0: i32) -> (i32, i32) {
    %c0_i32 = arith.constant 0 : i32
    %c0_i32_0 = arith.constant 0 : i32
    return %arg0, %c0_i32 : i32, i32
  }
  func.func @transform_1(%arg0: i32) -> (i32, i32) {
    %c0_i32 = arith.constant 0 : i32
    %c0_i32_0 = arith.constant 0 : i32
    return %arg0, %c0_i32 : i32, i32
  }
  func.func @transform_2(%arg0: i32) -> (i32, i32) {
    %c0_i32 = arith.constant 0 : i32
    %c0_i32_0 = arith.constant 0 : i32
    return %arg0, %c0_i32 : i32, i32
  }
  func.func @transform_3(%arg0: i32) -> (i32, i32, i32) {
    %c0_i32 = arith.constant 0 : i32
    %c0_i32_0 = arith.constant 0 : i32
    %c0_i32_1 = arith.constant 0 : i32
    return %arg0, %c0_i32, %c0_i32_0 : i32, i32, i32
  }
}

</mosaic_0001>

<llo_original>
// kernel: tpu_custom_call.1
$region0: #{tpu_custom_call.1}
  #allocation0 [shape = 'u32[]', space=smem, size = 0x4, offset = 0x4, fixed_abs, tag = 'smem constant byte address 0x4 - core index']
  #allocation1 [shape = 'u32[144,128]{1,0:T(1,128)}', space=vmem, size = 0x12000, scoped, tag = 'internal scratch']
  %s0 = inlined_call_operand.hbm [shape: f32[16,128], index: 0, kind: input, shape index: {}]
  %s1 = inlined_call_operand.hbm [shape: f32[16,128], index: 1, kind: input, shape index: {}]
  %s2 = inlined_call_operand.hbm [shape: f32[16,128], index: 2, kind: input, shape index: {}]
  %s3 = inlined_call_operand.hbm [shape: f32[1,16,128], index: 3, kind: output, shape index: {}]
  %s4 = sld [smem:[#allocation0]]
  $region34: #{tpu_custom_call.1} parent=0
    _
  %s6 = ssub.s32 1, %s4
  %s7 = scalar_select 0, %s6, %s4
  $region1: #{tpu_custom_call.1} parent=0
    #allocation2 [shape = 'u8[8192]{0}', space=vmem, size = 0x2000, scoped, tag = 'input window, operand 0, single buffered']
    #allocation3 [shape = 's32[1]{0}', space=sflag, size = 0x4, scoped, tag = 'scoped memory for tpu_custom_call.1']
    #allocation4 [shape = 's32[1]{0}', space=sflag, size = 0x4, scoped, tag = 'scoped memory for tpu_custom_call.1']
    #allocation5 [shape = 'u8[8192]{0}', space=vmem, size = 0x2000, scoped, tag = 'input window, operand 1, single buffered']
    #allocation6 [shape = 's32[1]{0}', space=sflag, size = 0x4, scoped, tag = 'scoped memory for tpu_custom_call.1']
    #allocation7 [shape = 'u8[8192]{0}', space=vmem, size = 0x2000, scoped, tag = 'input window, operand 2, single buffered']
    #allocation8 [shape = 'u8[8192]{0}', space=vmem, size = 0x2000, scoped, tag = 'output window, operand 0, single buffered']
    %8 = vsyncpa [#allocation3], 0
    %9 = vsyncpa [#allocation6], 0
    %10 = vsyncpa [#allocation4], 0
    // Predicated region
    $region2: #{tpu_custom_call.1} parent=1 // pred_check
      _
    $region3: #{tpu_custom_call.1} parent=1 // pred_check_branch
      %12 = sbr.rel (0) target = $region5
    $region4: #{tpu_custom_call.1} parent=1 // pred_region
      %s14 = ssub.s32 256, 256
      %15 = vsyncadd [#allocation3], %s14
      %s16 = sshll.u32 [#allocation2], 4
      %s17 = int_to_ptr.vmem [resolvable:$true] %s16
      %22 = dma.hbm_to_vmem [thread:$0]  %s0, 256, %s17, [#allocation3], 128, 128, 8
    $region5: #{tpu_custom_call.1} parent=1 // pred_fallthru
      _
    // Predicated region
    $region6: #{tpu_custom_call.1} parent=1 // pred_check
      _
    $region7: #{tpu_custom_call.1} parent=1 // pred_check_branch
      %24 = sbr.rel (0) target = $region9
    $region8: #{tpu_custom_call.1} parent=1 // pred_region
      %s26 = ssub.s32 256, 256
      %27 = vsyncadd [#allocation6], %s26
      %s28 = sshll.u32 [#allocation5], 4
      %s29 = int_to_ptr.vmem [resolvable:$true] %s28
      %34 = dma.hbm_to_vmem [thread:$0]  %s1, 256, %s29, [#allocation6], 128, 128, 8
    $region9: #{tpu_custom_call.1} parent=1 // pred_fallthru
      _
    // Predicated region
    $region10: #{tpu_custom_call.1} parent=1 // pred_check
      _
    $region11: #{tpu_custom_call.1} parent=1 // pred_check_branch
      %36 = sbr.rel (0) target = $region13
    $region12: #{tpu_custom_call.1} parent=1 // pred_region
      %s38 = ssub.s32 256, 256
      %39 = vsyncadd [#allocation6], %s38
      %s40 = sshll.u32 [#allocation7], 4
      %s41 = int_to_ptr.vmem [resolvable:$true] %s40
      %46 = dma.hbm_to_vmem [thread:$0]  %s2, 256, %s41, [#allocation6], 128, 128, 8
    $region13: #{tpu_custom_call.1} parent=1 // pred_fallthru
      _
    // Predicated region
    $region14: #{tpu_custom_call.1} parent=1 // pred_check
      _
    $region15: #{tpu_custom_call.1} parent=1 // pred_check_branch
      %48 = sbr.rel (0) target = $region17
    $region16: #{tpu_custom_call.1} parent=1 // pred_region
      %49 = dma.done [#allocation3], 256
    $region17: #{tpu_custom_call.1} parent=1 // pred_fallthru
      _
    // Predicated region
    $region18: #{tpu_custom_call.1} parent=1 // pred_check
      _
    $region19: #{tpu_custom_call.1} parent=1 // pred_check_branch
      %51 = sbr.rel (0) target = $region21
    $region20: #{tpu_custom_call.1} parent=1 // pred_region
      %52 = dma.done [#allocation6], 256
    $region21: #{tpu_custom_call.1} parent=1 // pred_fallthru
      _
    // Predicated region
    $region22: #{tpu_custom_call.1} parent=1 // pred_check
      _
    $region23: #{tpu_custom_call.1} parent=1 // pred_check_branch
      %54 = sbr.rel (0) target = $region25
    $region24: #{tpu_custom_call.1} parent=1 // pred_region
      %55 = dma.done [#allocation6], 256
    $region25: #{tpu_custom_call.1} parent=1 // pred_fallthru
      _
    %v56 = vld [vmem:[#allocation2] sm:$0xff]
    %v57 = vld [vmem:[#allocation2 + $0x8] sm:$0xff]
    %v58 = vld [vmem:[#allocation5] sm:$0xff]
    %v59 = vld [vmem:[#allocation5 + $0x8] sm:$0xff]
    %v60 = vld [vmem:[#allocation7] sm:$0xff]
    %v61 = vld [vmem:[#allocation7 + $0x8] sm:$0xff]
    %v62 = vsub.f32 %v58, %v56
    %v63 = vsub.f32 %v59, %v57
    %v64 = vmax.f32 %v62, 0.0
    %v65 = vmax.f32 %v63, 0.0
    %v66 = vsub.f32 %v56, %v60
    %v67 = vsub.f32 %v57, %v61
    %v68 = vmax.f32 %v66, 0.0
    %v69 = vmax.f32 %v67, 0.0
    %v70 = vmul.f32 %v64, %v64
    %v71 = vmul.f32 %v65, %v65
    %v72 = vmul.f32 %v68, %v68
    %v73 = vmul.f32 %v69, %v69
    %v74 = vadd.f32 %v70, %v72
    %v75 = vadd.f32 %v71, %v73
    %76 = vst [vmem:[#allocation8] sm:$0xff] %v74
    %77 = vst [vmem:[#allocation8 + $0x8] sm:$0xff] %v75
    // Predicated region
    $region26: #{tpu_custom_call.1} parent=1 // pred_check
      _
    $region27: #{tpu_custom_call.1} parent=1 // pred_check_branch
      %79 = sbr.rel (0) target = $region29
    $region28: #{tpu_custom_call.1} parent=1 // pred_region
      %s81 = ssub.s32 256, 256
      %82 = vsyncadd [#allocation4], %s81
      %s83 = sshll.u32 [#allocation8], 4
      %s84 = int_to_ptr.vmem [resolvable:$true] %s83
      %89 = dma.vmem_to_hbm [thread:$0]  %s84, 256, %s3, [#allocation4], 128, 128, 8
    $region29: #{tpu_custom_call.1} parent=1 // pred_fallthru
      _
    // Predicated region
    $region30: #{tpu_custom_call.1} parent=1 // pred_check
      _
    $region31: #{tpu_custom_call.1} parent=1 // pred_check_branch
      %91 = sbr.rel (0) target = $region33
    $region32: #{tpu_custom_call.1} parent=1 // pred_region
      %92 = dma.done [#allocation4], 256
    $region33: #{tpu_custom_call.1} parent=1 // pred_fallthru
      _
    %93 = vsyncpa [#allocation3], 1
    %94 = vsyncpa [#allocation6], 1
    %95 = vsyncpa [#allocation4], 1

</llo_original>
